<compile_context>
chip_gen: v7x
topology: tpu7x:2x2x1
jax: 0.10.0
libtpu: 0.0.40
codegen_flags: <defaults>
</compile_context>

<pallas_src>
import jax
import jax.numpy as jnp
from jax.experimental import pallas as pl
from jax.experimental.pallas import tpu as pltpu

EPS = 1e-5
IN_FEATURES = 90
PAD = 128          # lane-dense width for every layer
NUM_LAYERS = 5


def _densenet_kernel(x_ref, w_ref, p_ref, out_ref):
    """x_ref: (B,128) bf16, w_ref: (5,128,128) bf16, p_ref: (5,8,128) f32
    (row 0 = bias, 1 = gamma, 2 = beta), out_ref: (B,128) f32."""
    inv_b = 1.0 / x_ref.shape[0]  # static batch size

    def layer(h_bf16, l, with_bn):
        p = p_ref[l]                                   # (8,128) f32
        z = (
            jnp.dot(h_bf16, w_ref[l], preferred_element_type=jnp.float32)
            + p[0:1, :]                                # bias
        )
        if not with_bn:
            return z
        # Two-pass batch stats: matches PyTorch train-mode normalization and
        # avoids E[x^2] - E[x]^2 cancellation.  Tiny f32 VPU/XLU work.
        mu = jnp.sum(z, axis=0, keepdims=True) * inv_b
        d = z - mu
        var = jnp.sum(d * d, axis=0, keepdims=True) * inv_b
        scale = p[1:2, :] * jax.lax.rsqrt(var + EPS)   # gamma / sqrt(var+eps)
        # Fused scale/shift + ReLU; cast to bf16 only for the next MXU op.
        return jnp.maximum(d * scale + p[2:3, :], 0.0).astype(jnp.bfloat16)

    h = x_ref[...]                                     # (B,128) bf16
    for l in range(NUM_LAYERS - 1):
        h = layer(h, l, with_bn=True)
    out_ref[...] = layer(h, NUM_LAYERS - 1, with_bn=False).astype(out_ref.dtype)


def prepare_params(params):
    """One-time host-side prep (call OUTSIDE the per-step path):
    pad every layer to 128x128, cast weights to bf16, and pack bias/gamma/beta
    into a (5,8,128) f32 slab.  Padded entries are zero so padded feature
    columns stay exactly zero through every BN+ReLU and the final matmul."""
    w_slab = jnp.zeros((NUM_LAYERS, PAD, PAD), jnp.float32)
    p_slab = jnp.zeros((NUM_LAYERS, 8, PAD), jnp.float32)
    idx = 0
    for l in range(NUM_LAYERS):
        w, b = params[idx], params[idx + 1]
        idx += 2
        k_in, n_out = w.shape
        w_slab = w_slab.at[l, :k_in, :n_out].set(w)
        p_slab = p_slab.at[l, 0, :n_out].set(b.reshape(-1))
        if l < NUM_LAYERS - 1:
            g, be = params[idx], params[idx + 1]
            idx += 2
            p_slab = p_slab.at[l, 1, :n_out].set(g.reshape(-1))
            p_slab = p_slab.at[l, 2, :n_out].set(be.reshape(-1))
    return w_slab.astype(jnp.bfloat16), p_slab


@jax.jit
def densenet_forward(x, w_slab, p_slab):
    """x: (B, 90) f32.  w_slab/p_slab: outputs of prepare_params (precomputed
    once).  Returns (B, 1) f32."""
    B = x.shape[0]
    x_pad = jnp.pad(x, ((0, 0), (0, PAD - x.shape[1]))).astype(jnp.bfloat16)
    out = pl.pallas_call(
        _densenet_kernel,
        out_shape=jax.ShapeDtypeStruct((B, PAD), jnp.float32),
        compiler_params=pltpu.CompilerParams(vmem_limit_bytes=2 << 20),
    )(x_pad, w_slab, p_slab)
    return out[:, :1]


def init_params(key):
    """Deterministic init mirroring PyTorch defaults:
    Linear: U(-1/sqrt(fan_in), 1/sqrt(fan_in)) for W and b.
    BatchNorm1d: gamma=1, beta=0.  Weights stored as (in, out): y = x @ W + b."""
    dims = [(90, 128), (128, 64), (64, 32), (32, 16), (16, 1)]
    params = []
    keys = jax.random.split(key, 2 * len(dims))
    for i, (fan_in, fan_out) in enumerate(dims):
        bound = 1.0 / jnp.sqrt(float(fan_in))
        w = jax.random.uniform(
            keys[2 * i], (fan_in, fan_out), jnp.float32, -bound, bound
        )
        b = jax.random.uniform(
            keys[2 * i + 1], (1, fan_out), jnp.float32, -bound, bound
        )
        params.append(w)
        params.append(b)
        if i < len(dims) - 1:  # BN after layers 1..4 only
            params.append(jnp.ones((1, fan_out), jnp.float32))   # gamma
            params.append(jnp.zeros((1, fan_out), jnp.float32))  # beta
    return params


def _reference_forward(x, params, mxu_dtype):
    """Pure-JAX reference mirroring the kernel math (bf16 MXU, f32 BN)."""
    idx = 0
    h = x
    for layer in range(NUM_LAYERS):
        w, b = params[idx], params[idx + 1]
        idx += 2
        h = (
            jnp.dot(
                h.astype(mxu_dtype),
                w.astype(mxu_dtype),
                preferred_element_type=jnp.float32,
            )
            + b
        )
        if layer < NUM_LAYERS - 1:
            g, be = params[idx], params[idx + 1]
            idx += 2
            mu = jnp.mean(h, axis=0, keepdims=True)
            d = h - mu
            var = jnp.mean(d * d, axis=0, keepdims=True)
            h = jnp.maximum(d * (g * jax.lax.rsqrt(var + EPS)) + be, 0.0)
    return h


def _pytorch_reference(x, params):
    """Full-f32 forward matching PyTorch train-mode BatchNorm1d normalization."""
    idx = 0
    h = x
    for layer in range(NUM_LAYERS):
        w, b = params[idx], params[idx + 1]
        idx += 2
        h = h @ w + b
        if layer < NUM_LAYERS - 1:
            g, be = params[idx], params[idx + 1]
            idx += 2
            mu = jnp.mean(h, axis=0, keepdims=True)
            var = jnp.mean((h - mu) ** 2, axis=0, keepdims=True)
            h = (h - mu) / jnp.sqrt(var + EPS) * g + be
            h = jnp.maximum(h, 0.0)
    return h


if __name__ == "__main__":
    key = jax.random.PRNGKey(0)
    k_x, k_p = jax.random.split(key)

    B = 16  # >=16 so bf16 activation tiles fill a full 16-sublane vreg
    x = jax.random.normal(k_x, (B, IN_FEATURES), dtype=jnp.float32)
    params = init_params(k_p)

    # One-time host prep (outside the jitted per-call path).
    w_slab, p_slab = prepare_params(params)

    out = jax.block_until_ready(densenet_forward(x, w_slab, p_slab))
    assert out.shape == (B, 1), out.shape

    # Strict check: same bf16-MXU / f32-BN math in pure JAX.
    ref_matched = _reference_forward(x, params, jnp.bfloat16)
    assert jnp.allclose(out, ref_matched, atol=2e-3, rtol=2e-3), float(
        jnp.max(jnp.abs(out - ref_matched))
    )

    # Semantics check: full-f32 PyTorch-style forward (bf16 MXU drifts slightly).
    ref_f32 = _pytorch_reference(x, params)
    assert jnp.allclose(out, ref_f32, atol=1e-1, rtol=1e-1), float(
        jnp.max(jnp.abs(out - ref_f32))
    )

    print("KERNEL_OK")
</pallas_src>

<mosaic_0001>
module attributes {stable_mosaic.version = 11 : i64} {
  func.func @_densenet_kernel(%arg0: memref<16x128xbf16, #tpu.memory_space<vmem>>, %arg1: memref<5x128x128xbf16, #tpu.memory_space<vmem>>, %arg2: memref<5x8x128xf32, #tpu.memory_space<vmem>>, %arg3: memref<16x128xf32, #tpu.memory_space<vmem>>) attributes {dimension_semantics = [], scalar_prefetch = 0 : i64, scratch_operands = 0 : i64, tpu.core_type = #tpu.core_type<tc>} {
    %c0 = arith.constant 0 : index
    %c0_0 = arith.constant 0 : index
    %0 = vector.load %arg0[%c0, %c0_0] : memref<16x128xbf16, #tpu.memory_space<vmem>>, vector<16x128xbf16>
    %c0_1 = arith.constant 0 : index
    %c0_2 = arith.constant 0 : index
    %c0_3 = arith.constant 0 : index
    %1 = vector.load %arg2[%c0_1, %c0_2, %c0_3] : memref<5x8x128xf32, #tpu.memory_space<vmem>>, vector<1x8x128xf32>
    %2 = vector.shape_cast %1 : vector<1x8x128xf32> to vector<8x128xf32>
    %c0_4 = arith.constant 0 : index
    %c0_5 = arith.constant 0 : index
    %c0_6 = arith.constant 0 : index
    %3 = vector.load %arg1[%c0_4, %c0_5, %c0_6] : memref<5x128x128xbf16, #tpu.memory_space<vmem>>, vector<1x128x128xbf16>
    %4 = vector.shape_cast %3 : vector<1x128x128xbf16> to vector<128x128xbf16>
    %cst = arith.constant dense<0.000000e+00> : vector<16x128xf32>
    %5 = tpu.matmul %0, %4, %cst {dimension_numbers = #tpu.dot_dimension_numbers<[1], [0], [0], [1], [0, 0, 1, 1], [], []>} : vector<16x128xbf16>, vector<128x128xbf16>, vector<16x128xf32> -> vector<16x128xf32>
    %6 = vector.extract_strided_slice %2 {offsets = [0, 0], sizes = [1, 128], strides = [1, 1]} : vector<8x128xf32> to vector<1x128xf32>
    %7 = vector.broadcast %6 : vector<1x128xf32> to vector<16x128xf32>
    %8 = arith.addf %5, %7 : vector<16x128xf32>
    %cst_7 = arith.constant dense<0.000000e+00> : vector<128xf32>
    %9 = vector.multi_reduction <add>, %8, %cst_7 [0] : vector<16x128xf32> to vector<128xf32>
    %10 = vector.shape_cast %9 : vector<128xf32> to vector<1x128xf32>
    %cst_8 = arith.constant 6.250000e-02 : f32
    %11 = vector.broadcast %cst_8 : f32 to vector<1x128xf32>
    %12 = arith.mulf %10, %11 : vector<1x128xf32>
    %13 = vector.broadcast %12 : vector<1x128xf32> to vector<16x128xf32>
    %14 = arith.subf %8, %13 : vector<16x128xf32>
    %15 = arith.mulf %14, %14 : vector<16x128xf32>
    %cst_9 = arith.constant dense<0.000000e+00> : vector<128xf32>
    %16 = vector.multi_reduction <add>, %15, %cst_9 [0] : vector<16x128xf32> to vector<128xf32>
    %17 = vector.shape_cast %16 : vector<128xf32> to vector<1x128xf32>
    %cst_10 = arith.constant 6.250000e-02 : f32
    %18 = vector.broadcast %cst_10 : f32 to vector<1x128xf32>
    %19 = arith.mulf %17, %18 : vector<1x128xf32>
    %20 = vector.extract_strided_slice %2 {offsets = [1, 0], sizes = [1, 128], strides = [1, 1]} : vector<8x128xf32> to vector<1x128xf32>
    %cst_11 = arith.constant 9.99999974E-6 : f32
    %21 = vector.broadcast %cst_11 : f32 to vector<1x128xf32>
    %22 = arith.addf %19, %21 : vector<1x128xf32>
    %23 = math.rsqrt %22 : vector<1x128xf32>
    %24 = arith.mulf %20, %23 : vector<1x128xf32>
    %25 = vector.broadcast %24 : vector<1x128xf32> to vector<16x128xf32>
    %26 = arith.mulf %14, %25 : vector<16x128xf32>
    %27 = vector.extract_strided_slice %2 {offsets = [2, 0], sizes = [1, 128], strides = [1, 1]} : vector<8x128xf32> to vector<1x128xf32>
    %28 = vector.broadcast %27 : vector<1x128xf32> to vector<16x128xf32>
    %29 = arith.addf %26, %28 : vector<16x128xf32>
    %cst_12 = arith.constant 0.000000e+00 : f32
    %30 = vector.broadcast %cst_12 : f32 to vector<16x128xf32>
    %31 = arith.maximumf %29, %30 : vector<16x128xf32>
    %32 = arith.truncf %31 : vector<16x128xf32> to vector<16x128xbf16>
    %c1 = arith.constant 1 : index
    %c0_13 = arith.constant 0 : index
    %c0_14 = arith.constant 0 : index
    %33 = vector.load %arg2[%c1, %c0_13, %c0_14] : memref<5x8x128xf32, #tpu.memory_space<vmem>>, vector<1x8x128xf32>
    %34 = vector.shape_cast %33 : vector<1x8x128xf32> to vector<8x128xf32>
    %c1_15 = arith.constant 1 : index
    %c0_16 = arith.constant 0 : index
    %c0_17 = arith.constant 0 : index
    %35 = vector.load %arg1[%c1_15, %c0_16, %c0_17] : memref<5x128x128xbf16, #tpu.memory_space<vmem>>, vector<1x128x128xbf16>
    %36 = vector.shape_cast %35 : vector<1x128x128xbf16> to vector<128x128xbf16>
    %cst_18 = arith.constant dense<0.000000e+00> : vector<16x128xf32>
    %37 = tpu.matmul %32, %36, %cst_18 {dimension_numbers = #tpu.dot_dimension_numbers<[1], [0], [0], [1], [0, 0, 1, 1], [], []>} : vector<16x128xbf16>, vector<128x128xbf16>, vector<16x128xf32> -> vector<16x128xf32>
    %38 = vector.extract_strided_slice %34 {offsets = [0, 0], sizes = [1, 128], strides = [1, 1]} : vector<8x128xf32> to vector<1x128xf32>
    %39 = vector.broadcast %38 : vector<1x128xf32> to vector<16x128xf32>
    %40 = arith.addf %37, %39 : vector<16x128xf32>
    %cst_19 = arith.constant dense<0.000000e+00> : vector<128xf32>
    %41 = vector.multi_reduction <add>, %40, %cst_19 [0] : vector<16x128xf32> to vector<128xf32>
    %42 = vector.shape_cast %41 : vector<128xf32> to vector<1x128xf32>
    %cst_20 = arith.constant 6.250000e-02 : f32
    %43 = vector.broadcast %cst_20 : f32 to vector<1x128xf32>
    %44 = arith.mulf %42, %43 : vector<1x128xf32>
    %45 = vector.broadcast %44 : vector<1x128xf32> to vector<16x128xf32>
    %46 = arith.subf %40, %45 : vector<16x128xf32>
    %47 = arith.mulf %46, %46 : vector<16x128xf32>
    %cst_21 = arith.constant dense<0.000000e+00> : vector<128xf32>
    %48 = vector.multi_reduction <add>, %47, %cst_21 [0] : vector<16x128xf32> to vector<128xf32>
    %49 = vector.shape_cast %48 : vector<128xf32> to vector<1x128xf32>
    %cst_22 = arith.constant 6.250000e-02 : f32
    %50 = vector.broadcast %cst_22 : f32 to vector<1x128xf32>
    %51 = arith.mulf %49, %50 : vector<1x128xf32>
    %52 = vector.extract_strided_slice %34 {offsets = [1, 0], sizes = [1, 128], strides = [1, 1]} : vector<8x128xf32> to vector<1x128xf32>
    %cst_23 = arith.constant 9.99999974E-6 : f32
    %53 = vector.broadcast %cst_23 : f32 to vector<1x128xf32>
    %54 = arith.addf %51, %53 : vector<1x128xf32>
    %55 = math.rsqrt %54 : vector<1x128xf32>
    %56 = arith.mulf %52, %55 : vector<1x128xf32>
    %57 = vector.broadcast %56 : vector<1x128xf32> to vector<16x128xf32>
    %58 = arith.mulf %46, %57 : vector<16x128xf32>
    %59 = vector.extract_strided_slice %34 {offsets = [2, 0], sizes = [1, 128], strides = [1, 1]} : vector<8x128xf32> to vector<1x128xf32>
    %60 = vector.broadcast %59 : vector<1x128xf32> to vector<16x128xf32>
    %61 = arith.addf %58, %60 : vector<16x128xf32>
    %cst_24 = arith.constant 0.000000e+00 : f32
    %62 = vector.broadcast %cst_24 : f32 to vector<16x128xf32>
    %63 = arith.maximumf %61, %62 : vector<16x128xf32>
    %64 = arith.truncf %63 : vector<16x128xf32> to vector<16x128xbf16>
    %c2 = arith.constant 2 : index
    %c0_25 = arith.constant 0 : index
    %c0_26 = arith.constant 0 : index
    %65 = vector.load %arg2[%c2, %c0_25, %c0_26] : memref<5x8x128xf32, #tpu.memory_space<vmem>>, vector<1x8x128xf32>
    %66 = vector.shape_cast %65 : vector<1x8x128xf32> to vector<8x128xf32>
    %c2_27 = arith.constant 2 : index
    %c0_28 = arith.constant 0 : index
    %c0_29 = arith.constant 0 : index
    %67 = vector.load %arg1[%c2_27, %c0_28, %c0_29] : memref<5x128x128xbf16, #tpu.memory_space<vmem>>, vector<1x128x128xbf16>
    %68 = vector.shape_cast %67 : vector<1x128x128xbf16> to vector<128x128xbf16>
    %cst_30 = arith.constant dense<0.000000e+00> : vector<16x128xf32>
    %69 = tpu.matmul %64, %68, %cst_30 {dimension_numbers = #tpu.dot_dimension_numbers<[1], [0], [0], [1], [0, 0, 1, 1], [], []>} : vector<16x128xbf16>, vector<128x128xbf16>, vector<16x128xf32> -> vector<16x128xf32>
    %70 = vector.extract_strided_slice %66 {offsets = [0, 0], sizes = [1, 128], strides = [1, 1]} : vector<8x128xf32> to vector<1x128xf32>
    %71 = vector.broadcast %70 : vector<1x128xf32> to vector<16x128xf32>
    %72 = arith.addf %69, %71 : vector<16x128xf32>
    %cst_31 = arith.constant dense<0.000000e+00> : vector<128xf32>
    %73 = vector.multi_reduction <add>, %72, %cst_31 [0] : vector<16x128xf32> to vector<128xf32>
    %74 = vector.shape_cast %73 : vector<128xf32> to vector<1x128xf32>
    %cst_32 = arith.constant 6.250000e-02 : f32
    %75 = vector.broadcast %cst_32 : f32 to vector<1x128xf32>
    %76 = arith.mulf %74, %75 : vector<1x128xf32>
    %77 = vector.broadcast %76 : vector<1x128xf32> to vector<16x128xf32>
    %78 = arith.subf %72, %77 : vector<16x128xf32>
    %79 = arith.mulf %78, %78 : vector<16x128xf32>
    %cst_33 = arith.constant dense<0.000000e+00> : vector<128xf32>
    %80 = vector.multi_reduction <add>, %79, %cst_33 [0] : vector<16x128xf32> to vector<128xf32>
    %81 = vector.shape_cast %80 : vector<128xf32> to vector<1x128xf32>
    %cst_34 = arith.constant 6.250000e-02 : f32
    %82 = vector.broadcast %cst_34 : f32 to vector<1x128xf32>
    %83 = arith.mulf %81, %82 : vector<1x128xf32>
    %84 = vector.extract_strided_slice %66 {offsets = [1, 0], sizes = [1, 128], strides = [1, 1]} : vector<8x128xf32> to vector<1x128xf32>
    %cst_35 = arith.constant 9.99999974E-6 : f32
    %85 = vector.broadcast %cst_35 : f32 to vector<1x128xf32>
    %86 = arith.addf %83, %85 : vector<1x128xf32>
    %87 = math.rsqrt %86 : vector<1x128xf32>
    %88 = arith.mulf %84, %87 : vector<1x128xf32>
    %89 = vector.broadcast %88 : vector<1x128xf32> to vector<16x128xf32>
    %90 = arith.mulf %78, %89 : vector<16x128xf32>
    %91 = vector.extract_strided_slice %66 {offsets = [2, 0], sizes = [1, 128], strides = [1, 1]} : vector<8x128xf32> to vector<1x128xf32>
    %92 = vector.broadcast %91 : vector<1x128xf32> to vector<16x128xf32>
    %93 = arith.addf %90, %92 : vector<16x128xf32>
    %cst_36 = arith.constant 0.000000e+00 : f32
    %94 = vector.broadcast %cst_36 : f32 to vector<16x128xf32>
    %95 = arith.maximumf %93, %94 : vector<16x128xf32>
    %96 = arith.truncf %95 : vector<16x128xf32> to vector<16x128xbf16>
    %c3 = arith.constant 3 : index
    %c0_37 = arith.constant 0 : index
    %c0_38 = arith.constant 0 : index
    %97 = vector.load %arg2[%c3, %c0_37, %c0_38] : memref<5x8x128xf32, #tpu.memory_space<vmem>>, vector<1x8x128xf32>
    %98 = vector.shape_cast %97 : vector<1x8x128xf32> to vector<8x128xf32>
    %c3_39 = arith.constant 3 : index
    %c0_40 = arith.constant 0 : index
    %c0_41 = arith.constant 0 : index
    %99 = vector.load %arg1[%c3_39, %c0_40, %c0_41] : memref<5x128x128xbf16, #tpu.memory_space<vmem>>, vector<1x128x128xbf16>
    %100 = vector.shape_cast %99 : vector<1x128x128xbf16> to vector<128x128xbf16>
    %cst_42 = arith.constant dense<0.000000e+00> : vector<16x128xf32>
    %101 = tpu.matmul %96, %100, %cst_42 {dimension_numbers = #tpu.dot_dimension_numbers<[1], [0], [0], [1], [0, 0, 1, 1], [], []>} : vector<16x128xbf16>, vector<128x128xbf16>, vector<16x128xf32> -> vector<16x128xf32>
    %102 = vector.extract_strided_slice %98 {offsets = [0, 0], sizes = [1, 128], strides = [1, 1]} : vector<8x128xf32> to vector<1x128xf32>
    %103 = vector.broadcast %102 : vector<1x128xf32> to vector<16x128xf32>
    %104 = arith.addf %101, %103 : vector<16x128xf32>
    %cst_43 = arith.constant dense<0.000000e+00> : vector<128xf32>
    %105 = vector.multi_reduction <add>, %104, %cst_43 [0] : vector<16x128xf32> to vector<128xf32>
    %106 = vector.shape_cast %105 : vector<128xf32> to vector<1x128xf32>
    %cst_44 = arith.constant 6.250000e-02 : f32
    %107 = vector.broadcast %cst_44 : f32 to vector<1x128xf32>
    %108 = arith.mulf %106, %107 : vector<1x128xf32>
    %109 = vector.broadcast %108 : vector<1x128xf32> to vector<16x128xf32>
    %110 = arith.subf %104, %109 : vector<16x128xf32>
    %111 = arith.mulf %110, %110 : vector<16x128xf32>
    %cst_45 = arith.constant dense<0.000000e+00> : vector<128xf32>
    %112 = vector.multi_reduction <add>, %111, %cst_45 [0] : vector<16x128xf32> to vector<128xf32>
    %113 = vector.shape_cast %112 : vector<128xf32> to vector<1x128xf32>
    %cst_46 = arith.constant 6.250000e-02 : f32
    %114 = vector.broadcast %cst_46 : f32 to vector<1x128xf32>
    %115 = arith.mulf %113, %114 : vector<1x128xf32>
    %116 = vector.extract_strided_slice %98 {offsets = [1, 0], sizes = [1, 128], strides = [1, 1]} : vector<8x128xf32> to vector<1x128xf32>
    %cst_47 = arith.constant 9.99999974E-6 : f32
    %117 = vector.broadcast %cst_47 : f32 to vector<1x128xf32>
    %118 = arith.addf %115, %117 : vector<1x128xf32>
    %119 = math.rsqrt %118 : vector<1x128xf32>
    %120 = arith.mulf %116, %119 : vector<1x128xf32>
    %121 = vector.broadcast %120 : vector<1x128xf32> to vector<16x128xf32>
    %122 = arith.mulf %110, %121 : vector<16x128xf32>
    %123 = vector.extract_strided_slice %98 {offsets = [2, 0], sizes = [1, 128], strides = [1, 1]} : vector<8x128xf32> to vector<1x128xf32>
    %124 = vector.broadcast %123 : vector<1x128xf32> to vector<16x128xf32>
    %125 = arith.addf %122, %124 : vector<16x128xf32>
    %cst_48 = arith.constant 0.000000e+00 : f32
    %126 = vector.broadcast %cst_48 : f32 to vector<16x128xf32>
    %127 = arith.maximumf %125, %126 : vector<16x128xf32>
    %128 = arith.truncf %127 : vector<16x128xf32> to vector<16x128xbf16>
    %c4 = arith.constant 4 : index
    %c0_49 = arith.constant 0 : index
    %c0_50 = arith.constant 0 : index
    %129 = vector.load %arg2[%c4, %c0_49, %c0_50] : memref<5x8x128xf32, #tpu.memory_space<vmem>>, vector<1x8x128xf32>
    %130 = vector.shape_cast %129 : vector<1x8x128xf32> to vector<8x128xf32>
    %c4_51 = arith.constant 4 : index
    %c0_52 = arith.constant 0 : index
    %c0_53 = arith.constant 0 : index
    %131 = vector.load %arg1[%c4_51, %c0_52, %c0_53] : memref<5x128x128xbf16, #tpu.memory_space<vmem>>, vector<1x128x128xbf16>
    %132 = vector.shape_cast %131 : vector<1x128x128xbf16> to vector<128x128xbf16>
    %cst_54 = arith.constant dense<0.000000e+00> : vector<16x128xf32>
    %133 = tpu.matmul %128, %132, %cst_54 {dimension_numbers = #tpu.dot_dimension_numbers<[1], [0], [0], [1], [0, 0, 1, 1], [], []>} : vector<16x128xbf16>, vector<128x128xbf16>, vector<16x128xf32> -> vector<16x128xf32>
    %134 = vector.extract_strided_slice %130 {offsets = [0, 0], sizes = [1, 128], strides = [1, 1]} : vector<8x128xf32> to vector<1x128xf32>
    %135 = vector.broadcast %134 : vector<1x128xf32> to vector<16x128xf32>
    %136 = arith.addf %133, %135 : vector<16x128xf32>
    %c0_55 = arith.constant 0 : index
    %c0_56 = arith.constant 0 : index
    %137 = vector.load %arg3[%c0_55, %c0_56] : memref<16x128xf32, #tpu.memory_space<vmem>>, vector<16x128xf32>
    tpu.vector_store %arg3[%c0_55, %c0_56], %136 {strides = array<i32>} : memref<16x128xf32, #tpu.memory_space<vmem>>, vector<16x128xf32>,
    return
  }
}

</mosaic_0001>

<llo_original>
// kernel: densenet_forward.1
$region0: #{densenet_forward.1}
  #allocation0 [shape = 'u32[]', space=smem, size = 0x4, offset = 0x4, fixed_abs, tag = 'smem constant byte address 0x4 - core index']
  #allocation1 [shape = 'u32[144,128]{1,0:T(1,128)}', space=vmem, size = 0x12000, scoped, tag = 'internal scratch']
  %s0 = inlined_call_operand.vmem [shape: bf16[16,128], index: 0, kind: input, shape index: {}]
  %s1 = inlined_call_operand.hbm [shape: bf16[5,128,128], index: 1, kind: input, shape index: {}]
  %s2 = inlined_call_operand.vmem [shape: f32[5,8,128], index: 2, kind: input, shape index: {}]
  %s3 = inlined_call_operand.vmem [shape: f32[16,128], index: 3, kind: output, shape index: {}]
  %s4 = sld [smem:[#allocation0]]
  $region26: #{densenet_forward.1} parent=0
    _
  %s6 = ssub.s32 1, %s4
  %s7 = scalar_select 0, %s6, %s4
  $region1: #{densenet_forward.1} parent=0
    #allocation2 [shape = 'u8[163840]{0}', space=vmem, size = 0x28000, scoped, tag = 'input window, operand 1, single buffered']
    #allocation3 [shape = 's32[1]{0}', space=sflag, size = 0x4, scoped, tag = 'scoped memory for densenet_forward.1']
    %8 = vsyncpa [#allocation3], 0
    // Predicated region
    $region2: #{densenet_forward.1} parent=1 // pred_check
      _
    $region3: #{densenet_forward.1} parent=1 // pred_check_branch
      %10 = sbr.rel (0) target = $region5
    $region4: #{densenet_forward.1} parent=1 // pred_region
      _
    $region5: #{densenet_forward.1} parent=1 // pred_fallthru
      _
    // Predicated region
    $region6: #{densenet_forward.1} parent=1 // pred_check
      _
    $region7: #{densenet_forward.1} parent=1 // pred_check_branch
      %12 = sbr.rel (0) target = $region9
    $region8: #{densenet_forward.1} parent=1 // pred_region
      %s14 = ssub.s32 5120, 5120
      %15 = vsyncadd [#allocation3], %s14
      %s16 = sshll.u32 [#allocation2], 4
      %s17 = int_to_ptr.vmem [resolvable:$true] %s16
      %22 = dma.hbm_to_vmem [thread:$0]  %s1, 5120, %s17, [#allocation3], 64, 64, 4
    $region9: #{densenet_forward.1} parent=1 // pred_fallthru
      _
    // Predicated region
    $region10: #{densenet_forward.1} parent=1 // pred_check
      _
    $region11: #{densenet_forward.1} parent=1 // pred_check_branch
      %24 = sbr.rel (0) target = $region13
    $region12: #{densenet_forward.1} parent=1 // pred_region
      _
    $region13: #{densenet_forward.1} parent=1 // pred_fallthru
      _
    // Predicated region
    $region14: #{densenet_forward.1} parent=1 // pred_check
      _
    $region15: #{densenet_forward.1} parent=1 // pred_check_branch
      %26 = sbr.rel (0) target = $region17
    $region16: #{densenet_forward.1} parent=1 // pred_region
      %27 = dma.done [#allocation3], 5120
    $region17: #{densenet_forward.1} parent=1 // pred_fallthru
      _
    %v29 = vld [vmem:[%s0] sm:$0xf]
    %v30 = vld [vmem:[%s0 + $0x4] sm:$0xf]
    %v31 = vld [vmem:[%s2] sm:$0xff]
    %v32 = vld [vmem:[#allocation2] sm:$0xf]
    %v33 = vld [vmem:[#allocation2 + $0x4] sm:$0xf]
    %v34 = vld [vmem:[#allocation2 + $0x8] sm:$0xf]
    %v35 = vld [vmem:[#allocation2 + $0xc] sm:$0xf]
    %v36 = vld [vmem:[#allocation2 + $0x10] sm:$0xf]
    %v37 = vld [vmem:[#allocation2 + $0x14] sm:$0xf]
    %v38 = vld [vmem:[#allocation2 + $0x18] sm:$0xf]
    %v39 = vld [vmem:[#allocation2 + $0x1c] sm:$0xf]
    %v40 = vld [vmem:[#allocation2 + $0x20] sm:$0xf]
    %v41 = vld [vmem:[#allocation2 + $0x24] sm:$0xf]
    %v42 = vld [vmem:[#allocation2 + $0x28] sm:$0xf]
    %v43 = vld [vmem:[#allocation2 + $0x2c] sm:$0xf]
    %v44 = vld [vmem:[#allocation2 + $0x30] sm:$0xf]
    %v45 = vld [vmem:[#allocation2 + $0x34] sm:$0xf]
    %v46 = vld [vmem:[#allocation2 + $0x38] sm:$0xf]
    %v47 = vld [vmem:[#allocation2 + $0x3c] sm:$0xf]
    %v48 = vlaneseq
    %v49 = vshrl.u32 %v48, 7
    %v50 = vsub.s32 0, %v49
    %v51 = vrot.slane %v31, %v50
    %v54 = vunpack.c.l.b16 %v29
    %v55 = vunpack.c.l.b16 %v30
    %v56 = vpack.c.b16 %v55, %v54
    %v74 = vunpack.c.l.b16 %v32
    %v75 = vunpack.c.l.b16 %v33
    %v76 = vunpack.c.l.b16 %v34
    %v77 = vunpack.c.l.b16 %v35
    %v78 = vunpack.c.l.b16 %v36
    %v79 = vunpack.c.l.b16 %v37
    %v80 = vunpack.c.l.b16 %v38
    %v81 = vunpack.c.l.b16 %v39
    %v82 = vunpack.c.l.b16 %v40
    %v83 = vunpack.c.l.b16 %v41
    %v84 = vunpack.c.l.b16 %v42
    %v85 = vunpack.c.l.b16 %v43
    %v86 = vunpack.c.l.b16 %v44
    %v87 = vunpack.c.l.b16 %v45
    %v88 = vunpack.c.l.b16 %v46
    %v89 = vunpack.c.l.b16 %v47
    %v90 = vpack.c.b16 %v75, %v74
    %v91 = vpack.c.b16 %v77, %v76
    %v92 = vpack.c.b16 %v79, %v78
    %v93 = vpack.c.b16 %v81, %v80
    %v94 = vpack.c.b16 %v83, %v82
    %v95 = vpack.c.b16 %v85, %v84
    %v96 = vpack.c.b16 %v87, %v86
    %v97 = vpack.c.b16 %v89, %v88
    %106 = vmatprep.subr.bf16.mxu0 0
    %107 = vmatpush1.bf16.msra.mxu0 %v90
    %108 = vmatprep.subr.bf16.mxu0 0
    %109 = vmatpush1.bf16.msra.mxu0 %v91
    %110 = vmatprep.subr.bf16.mxu0 0
    %111 = vmatpush1.bf16.msra.mxu0 %v92
    %112 = vmatprep.subr.bf16.mxu0 0
    %113 = vmatpush1.bf16.msra.mxu0 %v93
    %114 = vmatprep.subr.bf16.mxu0 0
    %115 = vmatpush1.bf16.msra.mxu0 %v94
    %116 = vmatprep.subr.bf16.mxu0 0
    %117 = vmatpush1.bf16.msra.mxu0 %v95
    %118 = vmatprep.subr.bf16.mxu0 0
    %119 = vmatpush1.bf16.msra.mxu0 %v96
    %120 = vmatprep.subr.bf16.mxu0 0
    %121 = vmatpush1.bf16.msra.mxu0 %v97
    %122 = vmatprep.subr.bf16.mxu0 0
    %123 = vmatpush1.bf16.msra.mxu0 0
    %124 = vmatprep.subr.bf16.mxu0 0
    %125 = vmatpush1.bf16.msra.mxu0 0
    %126 = vmatprep.subr.bf16.mxu0 0
    %127 = vmatpush1.bf16.msra.mxu0 0
    %128 = vmatprep.subr.bf16.mxu0 0
    %129 = vmatpush1.bf16.msra.mxu0 0
    %130 = vmatprep.subr.bf16.mxu0 0
    %131 = vmatpush1.bf16.msra.mxu0 0
    %132 = vmatprep.subr.bf16.mxu0 0
    %133 = vmatpush1.bf16.msra.mxu0 0
    %134 = vmatprep.subr.bf16.mxu0 0
    %135 = vmatpush1.bf16.msra.mxu0 0
    %136 = vmatprep.subr.bf16.mxu0 0
    %137 = vmatpush1.bf16.msra.mxu0 0
    %138 = vmatprep.mubr.bf16.mxu0 0
    %139 = vmatmul.mubr.bf16.gmra.mrb[0].mxu0 %v56
    %v140 = vpop.f32.mrb[0].mxu0
    %v141 = vadd.f32 %v51, %v140
    %v142 = vpop.f32.mrb[0].mxu0
    %v143 = vpop.f32.mrb[0].mxu0
    %v144 = vadd.f32 %v51, %v143
    %v145 = vpop.f32.mrb[0].mxu0
    %146 = vdwg.mxu0
    %v147 = vadd.f32 %v141, %v144
    %v148 = vrot.slane %v147, 4
    %v149 = vadd.f32 %v147, %v148
    %v150 = vrot.slane %v149, 2
    %v151 = vadd.f32 %v149, %v150
    %v152 = vrot.slane %v151, 1
    %v153 = vadd.f32 %v151, %v152
    %v154 = vmul.f32 %v153, 0.0625
    %v155 = vsub.f32 %v141, %v154
    %v156 = vsub.f32 %v144, %v154
    %v157 = vmul.f32 %v155, %v155
    %v158 = vmul.f32 %v156, %v156
    %v159 = vadd.f32 %v157, %v158
    %v160 = vrot.slane %v159, 4
    %v161 = vadd.f32 %v159, %v160
    %v162 = vrot.slane %v161, 2
    %v163 = vadd.f32 %v161, %v162
    %v164 = vrot.slane %v163, 1
    %v165 = vadd.f32 %v163, %v164
    %v166 = vmul.f32 %v165, 0.0625
    %v167 = vadd.f32 %v166, 1e-05
    %v168 = vrsqrt.pop %v167
    %v169 = vmul.f32 %v31, %v168
    %v170 = vlaneseq
    %v171 = vshrl.u32 %v170, 7
    %v172 = vsub.s32 1, %v171
    %v173 = vrot.slane %v169, %v172
    %v174 = vmul.f32 %v155, %v173
    %v175 = vmul.f32 %v156, %v173
    %v176 = vlaneseq
    %v177 = vshrl.u32 %v176, 7
    %v178 = vsub.s32 2, %v177
    %v179 = vrot.slane %v31, %v178
    %v180 = vadd.f32 %v174, %v179
    %v181 = vadd.f32 %v175, %v179
    %v182 = vmax.f32 %v180, 0.0
    %v183 = vmax.f32 %v181, 0.0
    %v184 = vpack.c.bf16 %v183, %v182
    %s185 = scalar_lea.vmem %s2, 8
    %v186 = vld [vmem:[%s185] sm:$0xff]
    %s187 = scalar_lea.vmem [#allocation2], 64
    %v188 = vld [vmem:[%s187] sm:$0xf]
    %v189 = vld [vmem:[%s187 + $0x4] sm:$0xf]
    %v190 = vld [vmem:[%s187 + $0x8] sm:$0xf]
    %v191 = vld [vmem:[%s187 + $0xc] sm:$0xf]
    %v192 = vld [vmem:[%s187 + $0x10] sm:$0xf]
    %v193 = vld [vmem:[%s187 + $0x14] sm:$0xf]
    %v194 = vld [vmem:[%s187 + $0x18] sm:$0xf]
    %v195 = vld [vmem:[%s187 + $0x1c] sm:$0xf]
    %v196 = vld [vmem:[%s187 + $0x20] sm:$0xf]
    %v197 = vld [vmem:[%s187 + $0x24] sm:$0xf]
    %v198 = vld [vmem:[%s187 + $0x28] sm:$0xf]
    %v199 = vld [vmem:[%s187 + $0x2c] sm:$0xf]
    %v200 = vld [vmem:[%s187 + $0x30] sm:$0xf]
    %v201 = vld [vmem:[%s187 + $0x34] sm:$0xf]
    %v202 = vld [vmem:[%s187 + $0x38] sm:$0xf]
    %v203 = vld [vmem:[%s187 + $0x3c] sm:$0xf]
    %v204 = vlaneseq
    %v205 = vshrl.u32 %v204, 7
    %v206 = vsub.s32 0, %v205
    %v207 = vrot.slane %v186, %v206
    %v224 = vunpack.c.l.b16 %v188
    %v225 = vunpack.c.l.b16 %v189
    %v226 = vunpack.c.l.b16 %v190
    %v227 = vunpack.c.l.b16 %v191
    %v228 = vunpack.c.l.b16 %v192
    %v229 = vunpack.c.l.b16 %v193
    %v230 = vunpack.c.l.b16 %v194
    %v231 = vunpack.c.l.b16 %v195
    %v232 = vunpack.c.l.b16 %v196
    %v233 = vunpack.c.l.b16 %v197
    %v234 = vunpack.c.l.b16 %v198
    %v235 = vunpack.c.l.b16 %v199
    %v236 = vunpack.c.l.b16 %v200
    %v237 = vunpack.c.l.b16 %v201
    %v238 = vunpack.c.l.b16 %v202
    %v239 = vunpack.c.l.b16 %v203
    %v240 = vpack.c.b16 %v225, %v224
    %v241 = vpack.c.b16 %v227, %v226
    %v242 = vpack.c.b16 %v229, %v228
    %v243 = vpack.c.b16 %v231, %v230
    %v244 = vpack.c.b16 %v233, %v232
    %v245 = vpack.c.b16 %v235, %v234
    %v246 = vpack.c.b16 %v237, %v236
    %v247 = vpack.c.b16 %v239, %v238
    %256 = vmatprep.subr.bf16.mxu0 0
    %257 = vmatpush1.bf16.msra.mxu0 %v240
    %258 = vmatprep.subr.bf16.mxu0 0
    %259 = vmatpush1.bf16.msra.mxu0 %v241
    %260 = vmatprep.subr.bf16.mxu0 0
    %261 = vmatpush1.bf16.msra.mxu0 %v242
    %262 = vmatprep.subr.bf16.mxu0 0
    %263 = vmatpush1.bf16.msra.mxu0 %v243
    %264 = vmatprep.subr.bf16.mxu0 0
    %265 = vmatpush1.bf16.msra.mxu0 %v244
    %266 = vmatprep.subr.bf16.mxu0 0
    %267 = vmatpush1.bf16.msra.mxu0 %v245
    %268 = vmatprep.subr.bf16.mxu0 0
    %269 = vmatpush1.bf16.msra.mxu0 %v246
    %270 = vmatprep.subr.bf16.mxu0 0
    %271 = vmatpush1.bf16.msra.mxu0 %v247
    %272 = vmatprep.subr.bf16.mxu0 0
    %273 = vmatpush1.bf16.msra.mxu0 0
    %274 = vmatprep.subr.bf16.mxu0 0
    %275 = vmatpush1.bf16.msra.mxu0 0
    %276 = vmatprep.subr.bf16.mxu0 0
    %277 = vmatpush1.bf16.msra.mxu0 0
    %278 = vmatprep.subr.bf16.mxu0 0
    %279 = vmatpush1.bf16.msra.mxu0 0
    %280 = vmatprep.subr.bf16.mxu0 0
    %281 = vmatpush1.bf16.msra.mxu0 0
    %282 = vmatprep.subr.bf16.mxu0 0
    %283 = vmatpush1.bf16.msra.mxu0 0
    %284 = vmatprep.subr.bf16.mxu0 0
    %285 = vmatpush1.bf16.msra.mxu0 0
    %286 = vmatprep.subr.bf16.mxu0 0
    %287 = vmatpush1.bf16.msra.mxu0 0
    %288 = vmatprep.mubr.bf16.mxu0 0
    %289 = vmatmul.mubr.bf16.gmra.mrb[0].mxu0 %v184
    %v290 = vpop.f32.mrb[0].mxu0
    %v291 = vadd.f32 %v207, %v290
    %v292 = vpop.f32.mrb[0].mxu0
    %v293 = vpop.f32.mrb[0].mxu0
    %v294 = vadd.f32 %v207, %v293
    %v295 = vpop.f32.mrb[0].mxu0
    %296 = vdwg.mxu0
    %v297 = vadd.f32 %v291, %v294
    %v298 = vrot.slane %v297, 4
    %v299 = vadd.f32 %v297, %v298
    %v300 = vrot.slane %v299, 2
    %v301 = vadd.f32 %v299, %v300
    %v302 = vrot.slane %v301, 1
    %v303 = vadd.f32 %v301, %v302
    %v304 = vmul.f32 %v303, 0.0625
    %v305 = vsub.f32 %v291, %v304
    %v306 = vsub.f32 %v294, %v304
    %v307 = vmul.f32 %v305, %v305
    %v308 = vmul.f32 %v306, %v306
    %v309 = vadd.f32 %v307, %v308
    %v310 = vrot.slane %v309, 4
    %v311 = vadd.f32 %v309, %v310
    %v312 = vrot.slane %v311, 2
    %v313 = vadd.f32 %v311, %v312
    %v314 = vrot.slane %v313, 1
    %v315 = vadd.f32 %v313, %v314
    %v316 = vmul.f32 %v315, 0.0625
    %v317 = vadd.f32 %v316, 1e-05
    %v318 = vrsqrt.pop %v317
    %v319 = vmul.f32 %v186, %v318
    %v320 = vlaneseq
    %v321 = vshrl.u32 %v320, 7
    %v322 = vsub.s32 1, %v321
    %v323 = vrot.slane %v319, %v322
    %v324 = vmul.f32 %v305, %v323
    %v325 = vmul.f32 %v306, %v323
    %v326 = vlaneseq
    %v327 = vshrl.u32 %v326, 7
    %v328 = vsub.s32 2, %v327
    %v329 = vrot.slane %v186, %v328
    %v330 = vadd.f32 %v324, %v329
    %v331 = vadd.f32 %v325, %v329
    %v332 = vmax.f32 %v330, 0.0
    %v333 = vmax.f32 %v331, 0.0
    %v334 = vpack.c.bf16 %v333, %v332
    %s335 = scalar_lea.vmem %s2, 16
    %v336 = vld [vmem:[%s335] sm:$0xff]
    %s337 = scalar_lea.vmem [#allocation2], 128
    %v338 = vld [vmem:[%s337] sm:$0xf]
    %v339 = vld [vmem:[%s337 + $0x4] sm:$0xf]
    %v340 = vld [vmem:[%s337 + $0x8] sm:$0xf]
    %v341 = vld [vmem:[%s337 + $0xc] sm:$0xf]
    %v342 = vld [vmem:[%s337 + $0x10] sm:$0xf]
    %v343 = vld [vmem:[%s337 + $0x14] sm:$0xf]
    %v344 = vld [vmem:[%s337 + $0x18] sm:$0xf]
    %v345 = vld [vmem:[%s337 + $0x1c] sm:$0xf]
    %v346 = vld [vmem:[%s337 + $0x20] sm:$0xf]
    %v347 = vld [vmem:[%s337 + $0x24] sm:$0xf]
    %v348 = vld [vmem:[%s337 + $0x28] sm:$0xf]
    %v349 = vld [vmem:[%s337 + $0x2c] sm:$0xf]
    %v350 = vld [vmem:[%s337 + $0x30] sm:$0xf]
    %v351 = vld [vmem:[%s337 + $0x34] sm:$0xf]
    %v352 = vld [vmem:[%s337 + $0x38] sm:$0xf]
    %v353 = vld [vmem:[%s337 + $0x3c] sm:$0xf]
    %v354 = vlaneseq
    %v355 = vshrl.u32 %v354, 7
    %v356 = vsub.s32 0, %v355
    %v357 = vrot.slane %v336, %v356
    %v374 = vunpack.c.l.b16 %v338
    %v375 = vunpack.c.l.b16 %v339
    %v376 = vunpack.c.l.b16 %v340
    %v377 = vunpack.c.l.b16 %v341
    %v378 = vunpack.c.l.b16 %v342
    %v379 = vunpack.c.l.b16 %v343
    %v380 = vunpack.c.l.b16 %v344
    %v381 = vunpack.c.l.b16 %v345
    %v382 = vunpack.c.l.b16 %v346
    %v383 = vunpack.c.l.b16 %v347
    %v384 = vunpack.c.l.b16 %v348
    %v385 = vunpack.c.l.b16 %v349
    %v386 = vunpack.c.l.b16 %v350
    %v387 = vunpack.c.l.b16 %v351
    %v388 = vunpack.c.l.b16 %v352
    %v389 = vunpack.c.l.b16 %v353
    %v390 = vpack.c.b16 %v375, %v374
    %v391 = vpack.c.b16 %v377, %v376
    %v392 = vpack.c.b16 %v379, %v378
    %v393 = vpack.c.b16 %v381, %v380
    %v394 = vpack.c.b16 %v383, %v382
    %v395 = vpack.c.b16 %v385, %v384
    %v396 = vpack.c.b16 %v387, %v386
    %v397 = vpack.c.b16 %v389, %v388
    %406 = vmatprep.subr.bf16.mxu0 0
    %407 = vmatpush1.bf16.msra.mxu0 %v390
    %408 = vmatprep.subr.bf16.mxu0 0
    %409 = vmatpush1.bf16.msra.mxu0 %v391
    %410 = vmatprep.subr.bf16.mxu0 0
    %411 = vmatpush1.bf16.msra.mxu0 %v392
    %412 = vmatprep.subr.bf16.mxu0 0
    %413 = vmatpush1.bf16.msra.mxu0 %v393
    %414 = vmatprep.subr.bf16.mxu0 0
    %415 = vmatpush1.bf16.msra.mxu0 %v394
    %416 = vmatprep.subr.bf16.mxu0 0
    %417 = vmatpush1.bf16.msra.mxu0 %v395
    %418 = vmatprep.subr.bf16.mxu0 0
    %419 = vmatpush1.bf16.msra.mxu0 %v396
    %420 = vmatprep.subr.bf16.mxu0 0
    %421 = vmatpush1.bf16.msra.mxu0 %v397
    %422 = vmatprep.subr.bf16.mxu0 0
    %423 = vmatpush1.bf16.msra.mxu0 0
    %424 = vmatprep.subr.bf16.mxu0 0
    %425 = vmatpush1.bf16.msra.mxu0 0
    %426 = vmatprep.subr.bf16.mxu0 0
    %427 = vmatpush1.bf16.msra.mxu0 0
    %428 = vmatprep.subr.bf16.mxu0 0
    %429 = vmatpush1.bf16.msra.mxu0 0
    %430 = vmatprep.subr.bf16.mxu0 0
    %431 = vmatpush1.bf16.msra.mxu0 0
    %432 = vmatprep.subr.bf16.mxu0 0
    %433 = vmatpush1.bf16.msra.mxu0 0
    %434 = vmatprep.subr.bf16.mxu0 0
    %435 = vmatpush1.bf16.msra.mxu0 0
    %436 = vmatprep.subr.bf16.mxu0 0
    %437 = vmatpush1.bf16.msra.mxu0 0
    %438 = vmatprep.mubr.bf16.mxu0 0
    %439 = vmatmul.mubr.bf16.gmra.mrb[0].mxu0 %v334
    %v440 = vpop.f32.mrb[0].mxu0
    %v441 = vadd.f32 %v357, %v440
    %v442 = vpop.f32.mrb[0].mxu0
    %v443 = vpop.f32.mrb[0].mxu0
    %v444 = vadd.f32 %v357, %v443
    %v445 = vpop.f32.mrb[0].mxu0
    %446 = vdwg.mxu0
    %v447 = vadd.f32 %v441, %v444
    %v448 = vrot.slane %v447, 4
    %v449 = vadd.f32 %v447, %v448
    %v450 = vrot.slane %v449, 2
    %v451 = vadd.f32 %v449, %v450
    %v452 = vrot.slane %v451, 1
    %v453 = vadd.f32 %v451, %v452
    %v454 = vmul.f32 %v453, 0.0625
    %v455 = vsub.f32 %v441, %v454
    %v456 = vsub.f32 %v444, %v454
    %v457 = vmul.f32 %v455, %v455
    %v458 = vmul.f32 %v456, %v456
    %v459 = vadd.f32 %v457, %v458
    %v460 = vrot.slane %v459, 4
    %v461 = vadd.f32 %v459, %v460
    %v462 = vrot.slane %v461, 2
    %v463 = vadd.f32 %v461, %v462
    %v464 = vrot.slane %v463, 1
    %v465 = vadd.f32 %v463, %v464
    %v466 = vmul.f32 %v465, 0.0625
    %v467 = vadd.f32 %v466, 1e-05
    %v468 = vrsqrt.pop %v467
    %v469 = vmul.f32 %v336, %v468
    %v470 = vlaneseq
    %v471 = vshrl.u32 %v470, 7
    %v472 = vsub.s32 1, %v471
    %v473 = vrot.slane %v469, %v472
    %v474 = vmul.f32 %v455, %v473
    %v475 = vmul.f32 %v456, %v473
    %v476 = vlaneseq
    %v477 = vshrl.u32 %v476, 7
    %v478 = vsub.s32 2, %v477
    %v479 = vrot.slane %v336, %v478
    %v480 = vadd.f32 %v474, %v479
    %v481 = vadd.f32 %v475, %v479
    %v482 = vmax.f32 %v480, 0.0
    %v483 = vmax.f32 %v481, 0.0
    %v484 = vpack.c.bf16 %v483, %v482
    %s485 = scalar_lea.vmem %s2, 24
    %v486 = vld [vmem:[%s485] sm:$0xff]
    %s487 = scalar_lea.vmem [#allocation2], 192
    %v488 = vld [vmem:[%s487] sm:$0xf]
    %v489 = vld [vmem:[%s487 + $0x4] sm:$0xf]
    %v490 = vld [vmem:[%s487 + $0x8] sm:$0xf]
    %v491 = vld [vmem:[%s487 + $0xc] sm:$0xf]
    %v492 = vld [vmem:[%s487 + $0x10] sm:$0xf]
    %v493 = vld [vmem:[%s487 + $0x14] sm:$0xf]
    %v494 = vld [vmem:[%s487 + $0x18] sm:$0xf]
    %v495 = vld [vmem:[%s487 + $0x1c] sm:$0xf]
    %v496 = vld [vmem:[%s487 + $0x20] sm:$0xf]
    %v497 = vld [vmem:[%s487 + $0x24] sm:$0xf]
    %v498 = vld [vmem:[%s487 + $0x28] sm:$0xf]
    %v499 = vld [vmem:[%s487 + $0x2c] sm:$0xf]
    %v500 = vld [vmem:[%s487 + $0x30] sm:$0xf]
    %v501 = vld [vmem:[%s487 + $0x34] sm:$0xf]
    %v502 = vld [vmem:[%s487 + $0x38] sm:$0xf]
    %v503 = vld [vmem:[%s487 + $0x3c] sm:$0xf]
    %v504 = vlaneseq
    %v505 = vshrl.u32 %v504, 7
    %v506 = vsub.s32 0, %v505
    %v507 = vrot.slane %v486, %v506
    %v524 = vunpack.c.l.b16 %v488
    %v525 = vunpack.c.l.b16 %v489
    %v526 = vunpack.c.l.b16 %v490
    %v527 = vunpack.c.l.b16 %v491
    %v528 = vunpack.c.l.b16 %v492
    %v529 = vunpack.c.l.b16 %v493
    %v530 = vunpack.c.l.b16 %v494
    %v531 = vunpack.c.l.b16 %v495
    %v532 = vunpack.c.l.b16 %v496
    %v533 = vunpack.c.l.b16 %v497
    %v534 = vunpack.c.l.b16 %v498
    %v535 = vunpack.c.l.b16 %v499
    %v536 = vunpack.c.l.b16 %v500
    %v537 = vunpack.c.l.b16 %v501
    %v538 = vunpack.c.l.b16 %v502
    %v539 = vunpack.c.l.b16 %v503
    %v540 = vpack.c.b16 %v525, %v524
    %v541 = vpack.c.b16 %v527, %v526
    %v542 = vpack.c.b16 %v529, %v528
    %v543 = vpack.c.b16 %v531, %v530
    %v544 = vpack.c.b16 %v533, %v532
    %v545 = vpack.c.b16 %v535, %v534
    %v546 = vpack.c.b16 %v537, %v536
    %v547 = vpack.c.b16 %v539, %v538
    %556 = vmatprep.subr.bf16.mxu0 0
    %557 = vmatpush1.bf16.msra.mxu0 %v540
    %558 = vmatprep.subr.bf16.mxu0 0
    %559 = vmatpush1.bf16.msra.mxu0 %v541
    %560 = vmatprep.subr.bf16.mxu0 0
    %561 = vmatpush1.bf16.msra.mxu0 %v542
    %562 = vmatprep.subr.bf16.mxu0 0
    %563 = vmatpush1.bf16.msra.mxu0 %v543
    %564 = vmatprep.subr.bf16.mxu0 0
    %565 = vmatpush1.bf16.msra.mxu0 %v544
    %566 = vmatprep.subr.bf16.mxu0 0
    %567 = vmatpush1.bf16.msra.mxu0 %v545
    %568 = vmatprep.subr.bf16.mxu0 0
    %569 = vmatpush1.bf16.msra.mxu0 %v546
    %570 = vmatprep.subr.bf16.mxu0 0
    %571 = vmatpush1.bf16.msra.mxu0 %v547
    %572 = vmatprep.subr.bf16.mxu0 0
    %573 = vmatpush1.bf16.msra.mxu0 0
    %574 = vmatprep.subr.bf16.mxu0 0
    %575 = vmatpush1.bf16.msra.mxu0 0
    %576 = vmatprep.subr.bf16.mxu0 0
    %577 = vmatpush1.bf16.msra.mxu0 0
    %578 = vmatprep.subr.bf16.mxu0 0
    %579 = vmatpush1.bf16.msra.mxu0 0
    %580 = vmatprep.subr.bf16.mxu0 0
    %581 = vmatpush1.bf16.msra.mxu0 0
    %582 = vmatprep.subr.bf16.mxu0 0
    %583 = vmatpush1.bf16.msra.mxu0 0
    %584 = vmatprep.subr.bf16.mxu0 0
    %585 = vmatpush1.bf16.msra.mxu0 0
    %586 = vmatprep.subr.bf16.mxu0 0
    %587 = vmatpush1.bf16.msra.mxu0 0
    %588 = vmatprep.mubr.bf16.mxu0 0
    %589 = vmatmul.mubr.bf16.gmra.mrb[0].mxu0 %v484
    %v590 = vpop.f32.mrb[0].mxu0
    %v591 = vadd.f32 %v507, %v590
    %v592 = vpop.f32.mrb[0].mxu0
    %v593 = vpop.f32.mrb[0].mxu0
    %v594 = vadd.f32 %v507, %v593
    %v595 = vpop.f32.mrb[0].mxu0
    %596 = vdwg.mxu0
    %v597 = vadd.f32 %v591, %v594
    %v598 = vrot.slane %v597, 4
    %v599 = vadd.f32 %v597, %v598
    %v600 = vrot.slane %v599, 2
    %v601 = vadd.f32 %v599, %v600
    %v602 = vrot.slane %v601, 1
    %v603 = vadd.f32 %v601, %v602
    %v604 = vmul.f32 %v603, 0.0625
    %v605 = vsub.f32 %v591, %v604
    %v606 = vsub.f32 %v594, %v604
    %v607 = vmul.f32 %v605, %v605
    %v608 = vmul.f32 %v606, %v606
    %v609 = vadd.f32 %v607, %v608
    %v610 = vrot.slane %v609, 4
    %v611 = vadd.f32 %v609, %v610
    %v612 = vrot.slane %v611, 2
    %v613 = vadd.f32 %v611, %v612
    %v614 = vrot.slane %v613, 1
    %v615 = vadd.f32 %v613, %v614
    %v616 = vmul.f32 %v615, 0.0625
    %v617 = vadd.f32 %v616, 1e-05
    %v618 = vrsqrt.pop %v617
    %v619 = vmul.f32 %v486, %v618
    %v620 = vlaneseq
    %v621 = vshrl.u32 %v620, 7
    %v622 = vsub.s32 1, %v621
    %v623 = vrot.slane %v619, %v622
    %v624 = vmul.f32 %v605, %v623
    %v625 = vmul.f32 %v606, %v623
    %v626 = vlaneseq
    %v627 = vshrl.u32 %v626, 7
    %v628 = vsub.s32 2, %v627
    %v629 = vrot.slane %v486, %v628
    %v630 = vadd.f32 %v624, %v629
    %v631 = vadd.f32 %v625, %v629
    %v632 = vmax.f32 %v630, 0.0
    %v633 = vmax.f32 %v631, 0.0
    %v634 = vpack.c.bf16 %v633, %v632
    %s635 = scalar_lea.vmem %s2, 32
    %v636 = vld [vmem:[%s635] sm:$0xff]
    %s637 = scalar_lea.vmem [#allocation2], 256
    %v638 = vld [vmem:[%s637] sm:$0xf]
    %v639 = vld [vmem:[%s637 + $0x4] sm:$0xf]
    %v640 = vld [vmem:[%s637 + $0x8] sm:$0xf]
    %v641 = vld [vmem:[%s637 + $0xc] sm:$0xf]
    %v642 = vld [vmem:[%s637 + $0x10] sm:$0xf]
    %v643 = vld [vmem:[%s637 + $0x14] sm:$0xf]
    %v644 = vld [vmem:[%s637 + $0x18] sm:$0xf]
    %v645 = vld [vmem:[%s637 + $0x1c] sm:$0xf]
    %v646 = vld [vmem:[%s637 + $0x20] sm:$0xf]
    %v647 = vld [vmem:[%s637 + $0x24] sm:$0xf]
    %v648 = vld [vmem:[%s637 + $0x28] sm:$0xf]
    %v649 = vld [vmem:[%s637 + $0x2c] sm:$0xf]
    %v650 = vld [vmem:[%s637 + $0x30] sm:$0xf]
    %v651 = vld [vmem:[%s637 + $0x34] sm:$0xf]
    %v652 = vld [vmem:[%s637 + $0x38] sm:$0xf]
    %v653 = vld [vmem:[%s637 + $0x3c] sm:$0xf]
    %v654 = vlaneseq
    %v655 = vshrl.u32 %v654, 7
    %v656 = vsub.s32 0, %v655
    %v657 = vrot.slane %v636, %v656
    %v674 = vunpack.c.l.b16 %v638
    %v675 = vunpack.c.l.b16 %v639
    %v676 = vunpack.c.l.b16 %v640
    %v677 = vunpack.c.l.b16 %v641
    %v678 = vunpack.c.l.b16 %v642
    %v679 = vunpack.c.l.b16 %v643
    %v680 = vunpack.c.l.b16 %v644
    %v681 = vunpack.c.l.b16 %v645
    %v682 = vunpack.c.l.b16 %v646
    %v683 = vunpack.c.l.b16 %v647
    %v684 = vunpack.c.l.b16 %v648
    %v685 = vunpack.c.l.b16 %v649
    %v686 = vunpack.c.l.b16 %v650
    %v687 = vunpack.c.l.b16 %v651
    %v688 = vunpack.c.l.b16 %v652
    %v689 = vunpack.c.l.b16 %v653
    %v690 = vpack.c.b16 %v675, %v674
    %v691 = vpack.c.b16 %v677, %v676
    %v692 = vpack.c.b16 %v679, %v678
    %v693 = vpack.c.b16 %v681, %v680
    %v694 = vpack.c.b16 %v683, %v682
    %v695 = vpack.c.b16 %v685, %v684
    %v696 = vpack.c.b16 %v687, %v686
    %v697 = vpack.c.b16 %v689, %v688
    %706 = vmatprep.subr.bf16.mxu0 0
    %707 = vmatpush1.bf16.msra.mxu0 %v690
    %708 = vmatprep.subr.bf16.mxu0 0
    %709 = vmatpush1.bf16.msra.mxu0 %v691
    %710 = vmatprep.subr.bf16.mxu0 0
    %711 = vmatpush1.bf16.msra.mxu0 %v692
    %712 = vmatprep.subr.bf16.mxu0 0
    %713 = vmatpush1.bf16.msra.mxu0 %v693
    %714 = vmatprep.subr.bf16.mxu0 0
    %715 = vmatpush1.bf16.msra.mxu0 %v694
    %716 = vmatprep.subr.bf16.mxu0 0
    %717 = vmatpush1.bf16.msra.mxu0 %v695
    %718 = vmatprep.subr.bf16.mxu0 0
    %719 = vmatpush1.bf16.msra.mxu0 %v696
    %720 = vmatprep.subr.bf16.mxu0 0
    %721 = vmatpush1.bf16.msra.mxu0 %v697
    %722 = vmatprep.subr.bf16.mxu0 0
    %723 = vmatpush1.bf16.msra.mxu0 0
    %724 = vmatprep.subr.bf16.mxu0 0
    %725 = vmatpush1.bf16.msra.mxu0 0
    %726 = vmatprep.subr.bf16.mxu0 0
    %727 = vmatpush1.bf16.msra.mxu0 0
    %728 = vmatprep.subr.bf16.mxu0 0
    %729 = vmatpush1.bf16.msra.mxu0 0
    %730 = vmatprep.subr.bf16.mxu0 0
    %731 = vmatpush1.bf16.msra.mxu0 0
    %732 = vmatprep.subr.bf16.mxu0 0
    %733 = vmatpush1.bf16.msra.mxu0 0
    %734 = vmatprep.subr.bf16.mxu0 0
    %735 = vmatpush1.bf16.msra.mxu0 0
    %736 = vmatprep.subr.bf16.mxu0 0
    %737 = vmatpush1.bf16.msra.mxu0 0
    %738 = vmatprep.mubr.bf16.mxu0 0
    %739 = vmatmul.mubr.bf16.gmra.mrb[0].mxu0 %v634
    %v740 = vpop.f32.mrb[0].mxu0
    %v741 = vadd.f32 %v657, %v740
    %v742 = vpop.f32.mrb[0].mxu0
    %v743 = vpop.f32.mrb[0].mxu0
    %v744 = vadd.f32 %v657, %v743
    %v745 = vpop.f32.mrb[0].mxu0
    %746 = vdwg.mxu0
    %747 = vst [vmem:[%s3] sm:$0xff] %v741
    %748 = vst [vmem:[%s3 + $0x8] sm:$0xff] %v744
    // Predicated region
    $region18: #{densenet_forward.1} parent=1 // pred_check
      _
    $region19: #{densenet_forward.1} parent=1 // pred_check_branch
      %750 = sbr.rel (0) target = $region21
    $region20: #{densenet_forward.1} parent=1 // pred_region
      _
    $region21: #{densenet_forward.1} parent=1 // pred_fallthru
      _
    // Predicated region
    $region22: #{densenet_forward.1} parent=1 // pred_check
      _
    $region23: #{densenet_forward.1} parent=1 // pred_check_branch
      %752 = sbr.rel (0) target = $region25
    $region24: #{densenet_forward.1} parent=1 // pred_region
      _
    $region25: #{densenet_forward.1} parent=1 // pred_fallthru
      _
    %753 = vsyncpa [#allocation3], 1

</llo_original>
